<compile_context>
chip_gen: v5e
topology: v5e:2x2
jax: 0.10.0
libtpu: 0.0.40
codegen_flags: <defaults>
</compile_context>

<pallas_src>
import functools
import math

import jax
import jax.numpy as jnp
from jax import lax
from jax.experimental import pallas as pl
from jax.experimental.pallas import tpu as pltpu


def _leaky_relu(x, slope=0.1):
    # Equivalent to where(x > 0, x, slope*x) for 0 < slope < 1, but only mul+max.
    return jnp.maximum(x, slope * x)


def _round_up(x, m):
    return ((x + m - 1) // m) * m


def _cdiv(a, b):
    return -(-a // b)


def _mlp_kernel(x_ref, w1_ref, b1_ref, w2_ref, b2_ref, w3_ref, b3_ref, o_ref):
    # block_1: Linear + LeakyReLU(0.1).  MXU matmul with f32 accumulation,
    # activation/bias math in f32 (no bf16 elementwise -> safe on v5e).
    h1 = jnp.dot(x_ref[...], w1_ref[...], preferred_element_type=jnp.float32)
    h1 = _leaky_relu(h1 + b1_ref[...])

    # block_2: Linear + LeakyReLU(0.1)
    h2 = jnp.dot(h1.astype(w2_ref.dtype), w2_ref[...],
                 preferred_element_type=jnp.float32)
    h2 = _leaky_relu(h2 + b2_ref[...])

    # fclayer: 128 -> 1 projection.  Contract the feature (lane) axis of both
    # operands (NT dims) so the result comes out batch-on-lanes: (8, block_b);
    # only row 0 is meaningful (rows 1..7 of w3 are zero padding).  h2 is cast to
    # w3's dtype so the bf16 path stays single-pass on the MXU; accumulation is
    # still f32 via preferred_element_type.  Output write stays lane-dense.
    out = lax.dot_general(w3_ref[...], h2.astype(w3_ref.dtype),
                          (((1,), (1,)), ((), ())),
                          preferred_element_type=jnp.float32)
    b3 = b3_ref[0, 0]                       # scalar bias from SMEM
    o_ref[...] = (out[0:1, :] + b3).astype(o_ref.dtype)


@functools.partial(jax.jit, static_argnames=("block_cap", "compute_dtype"))
def learner_forward(x, w1, b1, w2, b2, w3, b3, *, block_cap=4096,
                    compute_dtype=None):
    """x: [B, input_dim] f32 -> [B, 1] f32.

    Weights are stored transposed relative to torch ([in, out]) so the kernel
    computes y = x @ W + b directly.  `compute_dtype=jnp.bfloat16` casts x/W1/W2/W3
    for the MXU (f32 accumulation and f32 activations kept) — recommended on all
    TPU generations, including v5e (the MXU runs bf16 at full rate there and the
    cast halves x/W1/W2 HBM traffic; the VPU never sees bf16).
    """
    if block_cap % 128 != 0:
        raise ValueError("block_cap must be a multiple of 128")

    B, in_dim = x.shape
    hid = w1.shape[1]

    p_dtype = jnp.float32 if compute_dtype is None else compute_dtype
    if compute_dtype is not None:
        x = x.astype(compute_dtype)
        w1 = w1.astype(compute_dtype)
        w2 = w2.astype(compute_dtype)

    # ---- Batch tiling --------------------------------------------------------
    # Multiple-of-128 tiles (required for the (1, block_b) lane-dense out block
    # once it is not the full last dim); padding never exceeds ~one block; grid
    # forced to >= 2 (and even) for b >= 256 so both v7x TensorCores get work.
    b128 = _round_up(B, 128)
    n_steps = _cdiv(b128, block_cap)
    if b128 >= 256:
        n_steps = max(n_steps, 2)
    if n_steps > 1 and n_steps % 2:
        n_steps += 1
    block_b = _round_up(_cdiv(b128, n_steps), 128)
    b_pad = n_steps * block_b
    if b_pad != B:
        x = jnp.pad(x, ((0, b_pad - B), (0, 0)))   # padded rows are zeros

    # ---- Parameters in kernel-friendly layouts (done once, under jit) --------
    b1_2d = b1.reshape(1, hid).astype(jnp.float32)
    b2_2d = b2.reshape(1, hid).astype(jnp.float32)
    w3_row = w3.reshape(1, hid).astype(p_dtype)
    w3_pad = jnp.pad(w3_row, ((0, 7), (0, 0)))      # (8, hid), rows 1..7 zero
    b3_2d = b3.reshape(1, 1).astype(jnp.float32)    # scalar, goes to SMEM

    grid = (n_steps,)

    # ---- Cost / VMEM hints ----------------------------------------------------
    flops = 2 * b_pad * (in_dim * hid + hid * hid + hid)
    bytes_accessed = (
        x.size * x.dtype.itemsize
        + w1.size * w1.dtype.itemsize
        + w2.size * w2.dtype.itemsize
        + w3_pad.size * w3_pad.dtype.itemsize + (2 * hid + 1) * 4
        + b_pad * 4)
    cost = pl.CostEstimate(flops=flops, transcendentals=0,
                           bytes_accessed=bytes_accessed)

    # Conservative per-step footprint: double-buffered x tile + out row,
    # resident params (x2), h1/h2 f32 temporaries.  Clamp into [32, 56] MiB so we
    # never trip v5e's 16 MiB scoped default nor v7x's 64 MiB physical VMEM.
    est_vmem = (
        2 * block_b * in_dim * x.dtype.itemsize
        + 2 * block_b * 4
        + 2 * (in_dim + hid + 10) * hid * w1.dtype.itemsize
        + 2 * block_b * hid * 4)
    vmem_limit = int(min(56 << 20, max(32 << 20, 2 * est_vmem)))

    out = pl.pallas_call(
        _mlp_kernel,
        out_shape=jax.ShapeDtypeStruct((1, b_pad), jnp.float32),
        grid_spec=pltpu.PrefetchScalarGridSpec(
            num_scalar_prefetch=0,
            grid=grid,
            in_specs=[
                pl.BlockSpec((block_b, in_dim), lambda i: (i, 0)),   # x tile
                # Weight/bias index_maps are constant -> DMA'd once (resident).
                pl.BlockSpec((in_dim, hid), lambda i: (0, 0)),       # W1
                pl.BlockSpec((1, hid), lambda i: (0, 0)),            # b1
                pl.BlockSpec((hid, hid), lambda i: (0, 0)),          # W2
                pl.BlockSpec((1, hid), lambda i: (0, 0)),            # b2
                pl.BlockSpec((8, hid), lambda i: (0, 0)),            # W3 (padded)
                pl.BlockSpec(memory_space=pltpu.MemorySpace.SMEM),   # b3 scalar
            ],
            # Lane-dense output row: batch along lanes.
            out_specs=pl.BlockSpec((1, block_b), lambda i: (0, i)),
        ),
        compiler_params=pltpu.CompilerParams(
            dimension_semantics=("parallel",),   # megacore batch split on v7x
            vmem_limit_bytes=vmem_limit,
        ),
        cost_estimate=cost,
    )(x, w1, b1_2d, w2, b2_2d, w3_pad, b3_2d)

    # Layout plumbing back to the module's [B, 1] output.
    return out.reshape(b_pad, 1)[:B]


def init_params(key, input_dim, hid_dim):
    """Deterministic, torch.nn.Linear-style uniform init (synthetic weights)."""
    ks = jax.random.split(key, 6)

    def uniform(k, shape, fan_in):
        bound = 1.0 / math.sqrt(fan_in)
        return jax.random.uniform(k, shape, jnp.float32, -bound, bound)

    # Stored as [in, out] (transpose of torch's [out, in]).
    w1 = uniform(ks[0], (input_dim, hid_dim), input_dim)
    b1 = uniform(ks[1], (hid_dim,), input_dim)
    w2 = uniform(ks[2], (hid_dim, hid_dim), hid_dim)
    b2 = uniform(ks[3], (hid_dim,), hid_dim)
    w3 = uniform(ks[4], (hid_dim, 1), hid_dim)
    b3 = uniform(ks[5], (1,), hid_dim)
    return w1, b1, w2, b2, w3, b3


def reference_forward(x, w1, b1, w2, b2, w3, b3):
    h1 = jnp.where(x @ w1 + b1 > 0, x @ w1 + b1, 0.1 * (x @ w1 + b1))
    h2 = jnp.where(h1 @ w2 + b2 > 0, h1 @ w2 + b2, 0.1 * (h1 @ w2 + b2))
    return h2 @ w3 + b3


if __name__ == "__main__":
    key = jax.random.PRNGKey(0)
    k_x, k_p = jax.random.split(key)

    batch, input_dim, hid_dim = 16, 32, 128
    x = jax.random.normal(k_x, (batch, input_dim), jnp.float32)
    params = init_params(k_p, input_dim, hid_dim)
    ref = reference_forward(x, *params)

    # f32 path, single tile (B < 256 -> grid of 1).
    out = jax.block_until_ready(learner_forward(x, *params))
    assert out.shape == (batch, 1)
    assert jnp.allclose(out, ref, atol=2e-4, rtol=2e-4), "f32 mismatch vs reference"

    # Multi-step grid + padded tail with a small block_cap (exercises the
    # tiling / even-grid / padding path: b128=384 -> 4 steps of 128 rows).
    x2 = jax.random.normal(k_x, (300, input_dim), jnp.float32)
    out2 = jax.block_until_ready(learner_forward(x2, *params, block_cap=128))
    ref2 = reference_forward(x2, *params)
    assert out2.shape == (300, 1)
    assert jnp.allclose(out2, ref2, atol=2e-4, rtol=2e-4), "tiled mismatch vs reference"

    # Same batch with default block_cap: forces exactly 2 parallel grid steps
    # (v7x megacore split path).
    out3 = jax.block_until_ready(learner_forward(x2, *params))
    assert out3.shape == (300, 1)
    assert jnp.allclose(out3, ref2, atol=2e-4, rtol=2e-4), "2-step mismatch vs reference"

    # bf16 compute path (HBM-bandwidth optimization on all chips incl. v5e),
    # loose tolerance.
    out_bf16 = jax.block_until_ready(
        learner_forward(x, *params, compute_dtype=jnp.bfloat16))
    assert jnp.allclose(out_bf16, ref, atol=0.05, rtol=0.05), "bf16 mismatch vs reference"

    print("KERNEL_OK")
</pallas_src>

<mosaic_0001>
module attributes {stable_mosaic.version = 11 : i64} {
  func.func @_mlp_kernel(%arg0: i32, %arg1: memref<128x32xf32, #tpu.memory_space<vmem>>, %arg2: memref<32x128xf32, #tpu.memory_space<vmem>>, %arg3: memref<1x128xf32, #tpu.memory_space<vmem>>, %arg4: memref<128x128xf32, #tpu.memory_space<vmem>>, %arg5: memref<1x128xf32, #tpu.memory_space<vmem>>, %arg6: memref<8x128xf32, #tpu.memory_space<vmem>>, %arg7: memref<1x1xf32, #tpu.memory_space<smem>>, %arg8: memref<1x128xf32, #tpu.memory_space<vmem>>) attributes {dimension_semantics = [#tpu.dimension_semantics<parallel>], iteration_bounds = array<i64: 1>, scalar_prefetch = 0 : i64, scratch_operands = 0 : i64, tpu.core_type = #tpu.core_type<tc>, window_params = [{transform_indices = @transform_0, window_bounds = array<i64: 128, 32>}, {pipeline_mode = #tpu.pipeline_mode<synchronous>, transform_indices = @transform_1, window_bounds = array<i64: 32, 128>}, {pipeline_mode = #tpu.pipeline_mode<synchronous>, transform_indices = @transform_2, window_bounds = array<i64: 1, 128>}, {pipeline_mode = #tpu.pipeline_mode<synchronous>, transform_indices = @transform_3, window_bounds = array<i64: 128, 128>}, {pipeline_mode = #tpu.pipeline_mode<synchronous>, transform_indices = @transform_4, window_bounds = array<i64: 1, 128>}, {pipeline_mode = #tpu.pipeline_mode<synchronous>, transform_indices = @transform_5, window_bounds = array<i64: 8, 128>}, {transform_indices = @transform_6, window_bounds = array<i64: 1, 1>}, {transform_indices = @transform_7, window_bounds = array<i64: 1, 128>}]} {
    %c0 = arith.constant 0 : index
    %c0_0 = arith.constant 0 : index
    %0 = vector.load %arg1[%c0, %c0_0] : memref<128x32xf32, #tpu.memory_space<vmem>>, vector<128x32xf32>
    %c0_1 = arith.constant 0 : index
    %c0_2 = arith.constant 0 : index
    %1 = vector.load %arg2[%c0_1, %c0_2] : memref<32x128xf32, #tpu.memory_space<vmem>>, vector<32x128xf32>
    %cst = arith.constant dense<0.000000e+00> : vector<128x128xf32>
    %2 = tpu.matmul %0, %1, %cst {dimension_numbers = #tpu.dot_dimension_numbers<[1], [0], [0], [1], [0, 0, 1, 1], [], []>} : vector<128x32xf32>, vector<32x128xf32>, vector<128x128xf32> -> vector<128x128xf32>
    %c0_3 = arith.constant 0 : index
    %c0_4 = arith.constant 0 : index
    %3 = vector.load %arg3[%c0_3, %c0_4] : memref<1x128xf32, #tpu.memory_space<vmem>>, vector<1x128xf32>
    %4 = vector.broadcast %3 : vector<1x128xf32> to vector<128x128xf32>
    %5 = arith.addf %2, %4 : vector<128x128xf32>
    %cst_5 = arith.constant 1.000000e-01 : f32
    %6 = vector.broadcast %cst_5 : f32 to vector<128x128xf32>
    %7 = arith.mulf %6, %5 : vector<128x128xf32>
    %8 = arith.maximumf %5, %7 : vector<128x128xf32>
    %c0_6 = arith.constant 0 : index
    %c0_7 = arith.constant 0 : index
    %9 = vector.load %arg4[%c0_6, %c0_7] : memref<128x128xf32, #tpu.memory_space<vmem>>, vector<128x128xf32>
    %cst_8 = arith.constant dense<0.000000e+00> : vector<128x128xf32>
    %10 = tpu.matmul %8, %9, %cst_8 {dimension_numbers = #tpu.dot_dimension_numbers<[1], [0], [0], [1], [0, 0, 1, 1], [], []>} : vector<128x128xf32>, vector<128x128xf32>, vector<128x128xf32> -> vector<128x128xf32>
    %c0_9 = arith.constant 0 : index
    %c0_10 = arith.constant 0 : index
    %11 = vector.load %arg5[%c0_9, %c0_10] : memref<1x128xf32, #tpu.memory_space<vmem>>, vector<1x128xf32>
    %12 = vector.broadcast %11 : vector<1x128xf32> to vector<128x128xf32>
    %13 = arith.addf %10, %12 : vector<128x128xf32>
    %cst_11 = arith.constant 1.000000e-01 : f32
    %14 = vector.broadcast %cst_11 : f32 to vector<128x128xf32>
    %15 = arith.mulf %14, %13 : vector<128x128xf32>
    %16 = arith.maximumf %13, %15 : vector<128x128xf32>
    %c0_12 = arith.constant 0 : index
    %c0_13 = arith.constant 0 : index
    %17 = vector.load %arg6[%c0_12, %c0_13] : memref<8x128xf32, #tpu.memory_space<vmem>>, vector<8x128xf32>
    %cst_14 = arith.constant dense<0.000000e+00> : vector<8x128xf32>
    %18 = tpu.matmul %17, %16, %cst_14 {dimension_numbers = #tpu.dot_dimension_numbers<[1], [1], [0], [0], [0, 0, 1, 0], [], []>} : vector<8x128xf32>, vector<128x128xf32>, vector<8x128xf32> -> vector<8x128xf32>
    %c0_15 = arith.constant 0 : index
    %c0_16 = arith.constant 0 : index
    %19 = memref.load %arg7[%c0_15, %c0_16] : memref<1x1xf32, #tpu.memory_space<smem>>
    %20 = vector.extract_strided_slice %18 {offsets = [0, 0], sizes = [1, 128], strides = [1, 1]} : vector<8x128xf32> to vector<1x128xf32>
    %21 = vector.broadcast %19 : f32 to vector<1x128xf32>
    %22 = arith.addf %20, %21 : vector<1x128xf32>
    %c0_17 = arith.constant 0 : index
    %c0_18 = arith.constant 0 : index
    %23 = vector.load %arg8[%c0_17, %c0_18] : memref<1x128xf32, #tpu.memory_space<vmem>>, vector<1x128xf32>
    tpu.vector_store %arg8[%c0_17, %c0_18], %22 {strides = array<i32>} : memref<1x128xf32, #tpu.memory_space<vmem>>, vector<1x128xf32>,
    return
  }
  func.func @transform_0(%arg0: i32) -> (i32, i32) {
    %c0_i32 = arith.constant 0 : i32
    %c0_i32_0 = arith.constant 0 : i32
    return %arg0, %c0_i32 : i32, i32
  }
  func.func @transform_1(%arg0: i32) -> (i32, i32) {
    %c0_i32 = arith.constant 0 : i32
    %c0_i32_0 = arith.constant 0 : i32
    %c0_i32_1 = arith.constant 0 : i32
    return %c0_i32, %c0_i32_0 : i32, i32
  }
  func.func @transform_2(%arg0: i32) -> (i32, i32) {
    %c0_i32 = arith.constant 0 : i32
    %c0_i32_0 = arith.constant 0 : i32
    %c0_i32_1 = arith.constant 0 : i32
    return %c0_i32, %c0_i32_0 : i32, i32
  }
  func.func @transform_3(%arg0: i32) -> (i32, i32) {
    %c0_i32 = arith.constant 0 : i32
    %c0_i32_0 = arith.constant 0 : i32
    %c0_i32_1 = arith.constant 0 : i32
    return %c0_i32, %c0_i32_0 : i32, i32
  }
  func.func @transform_4(%arg0: i32) -> (i32, i32) {
    %c0_i32 = arith.constant 0 : i32
    %c0_i32_0 = arith.constant 0 : i32
    %c0_i32_1 = arith.constant 0 : i32
    return %c0_i32, %c0_i32_0 : i32, i32
  }
  func.func @transform_5(%arg0: i32) -> (i32, i32) {
    %c0_i32 = arith.constant 0 : i32
    %c0_i32_0 = arith.constant 0 : i32
    %c0_i32_1 = arith.constant 0 : i32
    return %c0_i32, %c0_i32_0 : i32, i32
  }
  func.func @transform_6(%arg0: i32) -> (i32, i32) {
    %c0_i32 = arith.constant 0 : i32
    %c0_i32_0 = arith.constant 0 : i32
    %c0_i32_1 = arith.constant 0 : i32
    return %c0_i32, %c0_i32_0 : i32, i32
  }
  func.func @transform_7(%arg0: i32) -> (i32, i32) {
    %c0_i32 = arith.constant 0 : i32
    %c0_i32_0 = arith.constant 0 : i32
    return %c0_i32, %arg0 : i32, i32
  }
}

</mosaic_0001>

<llo_original>
// kernel: learner_forward.1
$region0: #{learner_forward.1}
  #allocation0 [shape = 'u32[]', space=smem, size = 0x4, offset = 0x4, fixed_abs, tag = 'smem constant byte address 0x4 - core index']
  #allocation1 [shape = 'u32[72,128]{1,0:T(1,128)}', space=vmem, size = 0x9000, scoped, tag = 'internal scratch']
  #allocation2 [shape = 'f32[1,1]{1,0:T(1,128)S(6)}', space=smem, size = 0x200, scoped, tag = 'scoped memory for learner_forward.1']
  %s0 = inlined_call_operand.vmem [shape: f32[128,32], index: 0, kind: input, shape index: {}]
  %s1 = inlined_call_operand.vmem [shape: f32[32,128], index: 1, kind: input, shape index: {}]
  %s2 = inlined_call_operand.vmem [shape: f32[1,128], index: 2, kind: input, shape index: {}]
  %s3 = inlined_call_operand.vmem [shape: f32[128,128], index: 3, kind: input, shape index: {}]
  %s4 = inlined_call_operand.vmem [shape: f32[1,128], index: 4, kind: input, shape index: {}]
  %s5 = inlined_call_operand.vmem [shape: f32[8,128], index: 5, kind: input, shape index: {}]
  %s6 = inlined_call_operand.<no memory space> [shape: f32[1,1], index: 6, kind: input, shape index: {}]
  %s7 = inlined_call_operand.vmem [shape: f32[1,128], index: 7, kind: output, shape index: {}]
  %s8 = sld [smem:[#allocation0]]
  $region38: #{learner_forward.1} parent=0
    _
  %s10 = ssub.s32 1, %s8
  %s11 = scalar_select 0, %s10, %s8
  %12 = sst [smem:[#allocation2]] %s6
  // Predicated region
  $region2: #{learner_forward.1} parent=0 // pred_check
    _
  $region3: #{learner_forward.1} parent=0 // pred_check_branch
    %14 = sbr.rel (0) target = $region5
  $region4: #{learner_forward.1} parent=0 // pred_region
    _
  $region5: #{learner_forward.1} parent=0 // pred_fallthru
    _
  // Predicated region
  $region6: #{learner_forward.1} parent=0 // pred_check
    _
  $region7: #{learner_forward.1} parent=0 // pred_check_branch
    %16 = sbr.rel (0) target = $region9
  $region8: #{learner_forward.1} parent=0 // pred_region
    _
  $region9: #{learner_forward.1} parent=0 // pred_fallthru
    _
  // Predicated region
  $region10: #{learner_forward.1} parent=0 // pred_check
    _
  $region11: #{learner_forward.1} parent=0 // pred_check_branch
    %18 = sbr.rel (0) target = $region13
  $region12: #{learner_forward.1} parent=0 // pred_region
    _
  $region13: #{learner_forward.1} parent=0 // pred_fallthru
    _
  // Predicated region
  $region14: #{learner_forward.1} parent=0 // pred_check
    _
  $region15: #{learner_forward.1} parent=0 // pred_check_branch
    %20 = sbr.rel (0) target = $region17
  $region16: #{learner_forward.1} parent=0 // pred_region
    _
  $region17: #{learner_forward.1} parent=0 // pred_fallthru
    _
  // Predicated region
  $region18: #{learner_forward.1} parent=0 // pred_check
    _
  $region19: #{learner_forward.1} parent=0 // pred_check_branch
    %22 = sbr.rel (0) target = $region21
  $region20: #{learner_forward.1} parent=0 // pred_region
    _
  $region21: #{learner_forward.1} parent=0 // pred_fallthru
    _
  // Predicated region
  $region22: #{learner_forward.1} parent=0 // pred_check
    _
  $region23: #{learner_forward.1} parent=0 // pred_check_branch
    %24 = sbr.rel (0) target = $region25
  $region24: #{learner_forward.1} parent=0 // pred_region
    _
  $region25: #{learner_forward.1} parent=0 // pred_fallthru
    _
  // Predicated region
  $region26: #{learner_forward.1} parent=0 // pred_check
    _
  $region27: #{learner_forward.1} parent=0 // pred_check_branch
    %26 = sbr.rel (0) target = $region29
  $region28: #{learner_forward.1} parent=0 // pred_region
    _
  $region29: #{learner_forward.1} parent=0 // pred_fallthru
    _
  %v27 = vld [vmem:[%s0] sm:$0xff]
  %v28 = vld [vmem:[%s0 + $0x8] sm:$0xff]
  %v29 = vld [vmem:[%s0 + $0x10] sm:$0xff]
  %v30 = vld [vmem:[%s0 + $0x18] sm:$0xff]
  %v31 = vld [vmem:[%s0 + $0x20] sm:$0xff]
  %v32 = vld [vmem:[%s0 + $0x28] sm:$0xff]
  %v33 = vld [vmem:[%s0 + $0x30] sm:$0xff]
  %v34 = vld [vmem:[%s0 + $0x38] sm:$0xff]
  %v35 = vld [vmem:[%s0 + $0x40] sm:$0xff]
  %v36 = vld [vmem:[%s0 + $0x48] sm:$0xff]
  %v37 = vld [vmem:[%s0 + $0x50] sm:$0xff]
  %v38 = vld [vmem:[%s0 + $0x58] sm:$0xff]
  %v39 = vld [vmem:[%s0 + $0x60] sm:$0xff]
  %v40 = vld [vmem:[%s0 + $0x68] sm:$0xff]
  %v41 = vld [vmem:[%s0 + $0x70] sm:$0xff]
  %v42 = vld [vmem:[%s0 + $0x78] sm:$0xff]
  %v43 = vld [vmem:[%s1] sm:$0xff]
  %v44 = vld [vmem:[%s1 + $0x8] sm:$0xff]
  %v45 = vld [vmem:[%s1 + $0x10] sm:$0xff]
  %v46 = vld [vmem:[%s1 + $0x18] sm:$0xff]
  %v47 = vld [vmem:[%s2] sm:$0x1]
  %v49 = vperm.slane %v47, 0
  %vm51 = vcmask 261120
  %v53 = vsel %vm51, %v27, 0
  %v56 = vsel %vm51, %v28, 0
  %v59 = vsel %vm51, %v29, 0
  %v62 = vsel %vm51, %v30, 0
  %v65 = vsel %vm51, %v31, 0
  %v68 = vsel %vm51, %v32, 0
  %v71 = vsel %vm51, %v33, 0
  %v74 = vsel %vm51, %v34, 0
  %v77 = vsel %vm51, %v35, 0
  %v80 = vsel %vm51, %v36, 0
  %v83 = vsel %vm51, %v37, 0
  %v86 = vsel %vm51, %v38, 0
  %v89 = vsel %vm51, %v39, 0
  %v92 = vsel %vm51, %v40, 0
  %v95 = vsel %vm51, %v41, 0
  %v98 = vsel %vm51, %v42, 0
  %100 = vmatpush.msra.mxu0 0.0
  %101 = vmatpush.msra.mxu0 0.0
  %102 = vmatpush.msra.mxu0 0.0
  %103 = vmatpush.msra.mxu0 0.0
  %104 = vmatpush.msra.mxu0 0.0
  %105 = vmatpush.msra.mxu0 0.0
  %106 = vmatpush.msra.mxu0 0.0
  %107 = vmatpush.msra.mxu0 0.0
  %108 = vmatpush.msra.mxu0 0.0
  %109 = vmatpush.msra.mxu0 0.0
  %110 = vmatpush.msra.mxu0 0.0
  %111 = vmatpush.msra.mxu0 0.0
  %112 = vmatpush.msra.mxu0 %v46
  %113 = vmatpush.msra.mxu0 %v45
  %114 = vmatpush.msra.mxu0 %v44
  %115 = vmatpush.msra.mxu0 %v43
  %116 = vmatmul.f32.gmra.mxu0 %v53
  %v117 = vpop.f32.mrf.mxu0
  %v118 = vadd.f32 %v49, %v117
  %119 = vmatmul.f32.gmra.mxu0 %v56
  %v120 = vpop.f32.mrf.mxu0
  %v121 = vadd.f32 %v49, %v120
  %122 = vmatmul.f32.gmra.mxu0 %v59
  %v123 = vpop.f32.mrf.mxu0
  %v124 = vadd.f32 %v49, %v123
  %125 = vmatmul.f32.gmra.mxu0 %v62
  %v126 = vpop.f32.mrf.mxu0
  %v127 = vadd.f32 %v49, %v126
  %128 = vmatmul.f32.gmra.mxu0 %v65
  %v129 = vpop.f32.mrf.mxu0
  %v130 = vadd.f32 %v49, %v129
  %131 = vmatmul.f32.gmra.mxu0 %v68
  %v132 = vpop.f32.mrf.mxu0
  %v133 = vadd.f32 %v49, %v132
  %134 = vmatmul.f32.gmra.mxu0 %v71
  %v135 = vpop.f32.mrf.mxu0
  %v136 = vadd.f32 %v49, %v135
  %137 = vmatmul.f32.gmra.mxu0 %v74
  %v138 = vpop.f32.mrf.mxu0
  %v139 = vadd.f32 %v49, %v138
  %140 = vmatmul.f32.gmra.mxu0 %v77
  %v141 = vpop.f32.mrf.mxu0
  %v142 = vadd.f32 %v49, %v141
  %143 = vmatmul.f32.gmra.mxu0 %v80
  %v144 = vpop.f32.mrf.mxu0
  %v145 = vadd.f32 %v49, %v144
  %146 = vmatmul.f32.gmra.mxu0 %v83
  %v147 = vpop.f32.mrf.mxu0
  %v148 = vadd.f32 %v49, %v147
  %149 = vmatmul.f32.gmra.mxu0 %v86
  %v150 = vpop.f32.mrf.mxu0
  %v151 = vadd.f32 %v49, %v150
  %152 = vmatmul.f32.gmra.mxu0 %v89
  %v153 = vpop.f32.mrf.mxu0
  %v154 = vadd.f32 %v49, %v153
  %155 = vmatmul.f32.gmra.mxu0 %v92
  %v156 = vpop.f32.mrf.mxu0
  %v157 = vadd.f32 %v49, %v156
  %158 = vmatmul.f32.gmra.mxu0 %v95
  %v159 = vpop.f32.mrf.mxu0
  %v160 = vadd.f32 %v49, %v159
  %161 = vmatmul.f32.gmra.mxu0 %v98
  %v162 = vpop.f32.mrf.mxu0
  %v163 = vadd.f32 %v49, %v162
  %164 = vdwg.mxu0
  %v165 = vmul.f32 %v118, 0.1
  %v166 = vmul.f32 %v121, 0.1
  %v167 = vmul.f32 %v124, 0.1
  %v168 = vmul.f32 %v127, 0.1
  %v169 = vmul.f32 %v130, 0.1
  %v170 = vmul.f32 %v133, 0.1
  %v171 = vmul.f32 %v136, 0.1
  %v172 = vmul.f32 %v139, 0.1
  %v173 = vmul.f32 %v142, 0.1
  %v174 = vmul.f32 %v145, 0.1
  %v175 = vmul.f32 %v148, 0.1
  %v176 = vmul.f32 %v151, 0.1
  %v177 = vmul.f32 %v154, 0.1
  %v178 = vmul.f32 %v157, 0.1
  %v179 = vmul.f32 %v160, 0.1
  %v180 = vmul.f32 %v163, 0.1
  %v181 = vmax.f32 %v118, %v165
  %v182 = vmax.f32 %v121, %v166
  %v183 = vmax.f32 %v124, %v167
  %v184 = vmax.f32 %v127, %v168
  %v185 = vmax.f32 %v130, %v169
  %v186 = vmax.f32 %v133, %v170
  %v187 = vmax.f32 %v136, %v171
  %v188 = vmax.f32 %v139, %v172
  %v189 = vmax.f32 %v142, %v173
  %v190 = vmax.f32 %v145, %v174
  %v191 = vmax.f32 %v148, %v175
  %v192 = vmax.f32 %v151, %v176
  %v193 = vmax.f32 %v154, %v177
  %v194 = vmax.f32 %v157, %v178
  %v195 = vmax.f32 %v160, %v179
  %v196 = vmax.f32 %v163, %v180
  %v197 = vld [vmem:[%s3] sm:$0xff]
  %v198 = vld [vmem:[%s3 + $0x8] sm:$0xff]
  %v199 = vld [vmem:[%s3 + $0x10] sm:$0xff]
  %v200 = vld [vmem:[%s3 + $0x18] sm:$0xff]
  %v201 = vld [vmem:[%s3 + $0x20] sm:$0xff]
  %v202 = vld [vmem:[%s3 + $0x28] sm:$0xff]
  %v203 = vld [vmem:[%s3 + $0x30] sm:$0xff]
  %v204 = vld [vmem:[%s3 + $0x38] sm:$0xff]
  %v205 = vld [vmem:[%s3 + $0x40] sm:$0xff]
  %v206 = vld [vmem:[%s3 + $0x48] sm:$0xff]
  %v207 = vld [vmem:[%s3 + $0x50] sm:$0xff]
  %v208 = vld [vmem:[%s3 + $0x58] sm:$0xff]
  %v209 = vld [vmem:[%s3 + $0x60] sm:$0xff]
  %v210 = vld [vmem:[%s3 + $0x68] sm:$0xff]
  %v211 = vld [vmem:[%s3 + $0x70] sm:$0xff]
  %v212 = vld [vmem:[%s3 + $0x78] sm:$0xff]
  %v213 = vld [vmem:[%s4] sm:$0x1]
  %v215 = vperm.slane %v213, 0
  %217 = vmatpush.msra.mxu0 %v212
  %218 = vmatpush.msra.mxu0 %v211
  %219 = vmatpush.msra.mxu0 %v210
  %220 = vmatpush.msra.mxu0 %v209
  %221 = vmatpush.msra.mxu0 %v208
  %222 = vmatpush.msra.mxu0 %v207
  %223 = vmatpush.msra.mxu0 %v206
  %224 = vmatpush.msra.mxu0 %v205
  %225 = vmatpush.msra.mxu0 %v204
  %226 = vmatpush.msra.mxu0 %v203
  %227 = vmatpush.msra.mxu0 %v202
  %228 = vmatpush.msra.mxu0 %v201
  %229 = vmatpush.msra.mxu0 %v200
  %230 = vmatpush.msra.mxu0 %v199
  %231 = vmatpush.msra.mxu0 %v198
  %232 = vmatpush.msra.mxu0 %v197
  %233 = vmatmul.f32.gmra.mxu0 %v181
  %v234 = vpop.f32.mrf.mxu0
  %v235 = vadd.f32 %v215, %v234
  %236 = vmatmul.f32.gmra.mxu0 %v182
  %v237 = vpop.f32.mrf.mxu0
  %v238 = vadd.f32 %v215, %v237
  %239 = vmatmul.f32.gmra.mxu0 %v183
  %v240 = vpop.f32.mrf.mxu0
  %v241 = vadd.f32 %v215, %v240
  %242 = vmatmul.f32.gmra.mxu0 %v184
  %v243 = vpop.f32.mrf.mxu0
  %v244 = vadd.f32 %v215, %v243
  %245 = vmatmul.f32.gmra.mxu0 %v185
  %v246 = vpop.f32.mrf.mxu0
  %v247 = vadd.f32 %v215, %v246
  %248 = vmatmul.f32.gmra.mxu0 %v186
  %v249 = vpop.f32.mrf.mxu0
  %v250 = vadd.f32 %v215, %v249
  %251 = vmatmul.f32.gmra.mxu0 %v187
  %v252 = vpop.f32.mrf.mxu0
  %v253 = vadd.f32 %v215, %v252
  %254 = vmatmul.f32.gmra.mxu0 %v188
  %v255 = vpop.f32.mrf.mxu0
  %v256 = vadd.f32 %v215, %v255
  %257 = vmatmul.f32.gmra.mxu0 %v189
  %v258 = vpop.f32.mrf.mxu0
  %v259 = vadd.f32 %v215, %v258
  %260 = vmatmul.f32.gmra.mxu0 %v190
  %v261 = vpop.f32.mrf.mxu0
  %v262 = vadd.f32 %v215, %v261
  %263 = vmatmul.f32.gmra.mxu0 %v191
  %v264 = vpop.f32.mrf.mxu0
  %v265 = vadd.f32 %v215, %v264
  %266 = vmatmul.f32.gmra.mxu0 %v192
  %v267 = vpop.f32.mrf.mxu0
  %v268 = vadd.f32 %v215, %v267
  %269 = vmatmul.f32.gmra.mxu0 %v193
  %v270 = vpop.f32.mrf.mxu0
  %v271 = vadd.f32 %v215, %v270
  %272 = vmatmul.f32.gmra.mxu0 %v194
  %v273 = vpop.f32.mrf.mxu0
  %v274 = vadd.f32 %v215, %v273
  %275 = vmatmul.f32.gmra.mxu0 %v195
  %v276 = vpop.f32.mrf.mxu0
  %v277 = vadd.f32 %v215, %v276
  %278 = vmatmul.f32.gmra.mxu0 %v196
  %v279 = vpop.f32.mrf.mxu0
  %v280 = vadd.f32 %v215, %v279
  %281 = vdwg.mxu0
  %v282 = vmul.f32 %v235, 0.1
  %v283 = vmul.f32 %v238, 0.1
  %v284 = vmul.f32 %v241, 0.1
  %v285 = vmul.f32 %v244, 0.1
  %v286 = vmul.f32 %v247, 0.1
  %v287 = vmul.f32 %v250, 0.1
  %v288 = vmul.f32 %v253, 0.1
  %v289 = vmul.f32 %v256, 0.1
  %v290 = vmul.f32 %v259, 0.1
  %v291 = vmul.f32 %v262, 0.1
  %v292 = vmul.f32 %v265, 0.1
  %v293 = vmul.f32 %v268, 0.1
  %v294 = vmul.f32 %v271, 0.1
  %v295 = vmul.f32 %v274, 0.1
  %v296 = vmul.f32 %v277, 0.1
  %v297 = vmul.f32 %v280, 0.1
  %v298 = vmax.f32 %v235, %v282
  %v299 = vmax.f32 %v238, %v283
  %v300 = vmax.f32 %v241, %v284
  %v301 = vmax.f32 %v244, %v285
  %v302 = vmax.f32 %v247, %v286
  %v303 = vmax.f32 %v250, %v287
  %v304 = vmax.f32 %v253, %v288
  %v305 = vmax.f32 %v256, %v289
  %v306 = vmax.f32 %v259, %v290
  %v307 = vmax.f32 %v262, %v291
  %v308 = vmax.f32 %v265, %v292
  %v309 = vmax.f32 %v268, %v293
  %v310 = vmax.f32 %v271, %v294
  %v311 = vmax.f32 %v274, %v295
  %v312 = vmax.f32 %v277, %v296
  %v313 = vmax.f32 %v280, %v297
  %v314 = vld [vmem:[%s5] sm:$0xff]
  %315 = vmatpush.xpose.msra.mxu0 %v313
  %316 = vmatpush.xpose.msra.mxu0 %v312
  %317 = vmatpush.xpose.msra.mxu0 %v311
  %318 = vmatpush.xpose.msra.mxu0 %v310
  %319 = vmatpush.xpose.msra.mxu0 %v309
  %320 = vmatpush.xpose.msra.mxu0 %v308
  %321 = vmatpush.xpose.msra.mxu0 %v307
  %322 = vmatpush.xpose.msra.mxu0 %v306
  %323 = vmatpush.xpose.msra.mxu0 %v305
  %324 = vmatpush.xpose.msra.mxu0 %v304
  %325 = vmatpush.xpose.msra.mxu0 %v303
  %326 = vmatpush.xpose.msra.mxu0 %v302
  %327 = vmatpush.xpose.msra.mxu0 %v301
  %328 = vmatpush.xpose.msra.mxu0 %v300
  %329 = vmatpush.xpose.msra.mxu0 %v299
  %330 = vmatpush.xpose.msra.mxu0 %v298
  %331 = vmatmul.f32.gmra.mxu0 %v314
  %v332 = vpop.f32.mrf.mxu0
  %v333 = vadd.f32 0.0, %v332
  %334 = vdwg.mxu0
  %s335 = sld [smem:[#allocation2]]
  %v336 = vstv %s335
  %v337 = vadd.f32 %v333, %v336
  %338 = vst [vmem:[%s7] sm:$0x1] %v337
  // Predicated region
  $region30: #{learner_forward.1} parent=0 // pred_check
    _
  $region31: #{learner_forward.1} parent=0 // pred_check_branch
    %340 = sbr.rel (0) target = $region33
  $region32: #{learner_forward.1} parent=0 // pred_region
    _
  $region33: #{learner_forward.1} parent=0 // pred_fallthru
    _
  // Predicated region
  $region34: #{learner_forward.1} parent=0 // pred_check
    _
  $region35: #{learner_forward.1} parent=0 // pred_check_branch
    %342 = sbr.rel (0) target = $region37
  $region36: #{learner_forward.1} parent=0 // pred_region
    _
  $region37: #{learner_forward.1} parent=0 // pred_fallthru
    _

</llo_original>
